<compile_context>
chip_gen: v7x
topology: tpu7x:2x2x1
jax: 0.10.0
libtpu: 0.0.40
codegen_flags: <defaults>
</compile_context>

<pallas_src>
import functools
import math

import jax
import jax.numpy as jnp
from jax.experimental import pallas as pl
from jax.experimental.pallas import tpu as pltpu


# ----------------------------------------------------------------------------
# Fused kernel: per (batch n, Do-tile j)
#   out[c, do, ho*wo] = bias[c] + sum_{ci,d,h,w} Wc[c,ci] Md[do,d] Mh[ho,h] Mw[wo,w] x[ci,d,h,w]
# computed as two 2-D MXU matmuls entirely in VMEM.
# ----------------------------------------------------------------------------
def _dsv_fused_kernel(x_ref, kdm_ref, khwt_ref, bias_ref, o_ref):
    # x_ref:    (1, Cin*D, H*W)          per-batch input slab
    # kdm_ref:  (Cout, do_blk, Cin*D)    kron(Wconv, Md) tile for this Do-tile
    # khwt_ref: (H*W, Ho*Wo)             kron(Mh, Mw)^T  (constant, VMEM-resident)
    # bias_ref: (Cout, 1, Ho*Wo)         conv bias, pre-broadcast along lanes
    # o_ref:    (1, Cout, do_blk, Ho*Wo) lane-dense output block
    cout, do_blk, cind = kdm_ref.shape
    howo = khwt_ref.shape[1]

    xb = x_ref[0]                                          # (Cin*D, H*W)
    kdm = kdm_ref[...].reshape(cout * do_blk, cind)        # (Cout*do_blk, Cin*D)

    # conv + depth interpolation (single matmul, lane = H*W)
    a = jnp.dot(kdm, xb, preferred_element_type=jnp.float32)   # (Cout*do_blk, H*W)
    # H & W interpolation jointly (single matmul, lane = Ho*Wo : lane-dense)
    b = jnp.dot(a, khwt_ref[...], preferred_element_type=jnp.float32)  # (Cout*do_blk, Ho*Wo)

    b = b.reshape(cout, do_blk, howo) + bias_ref[...]      # bias broadcast over do_blk
    o_ref[0] = b.astype(o_ref.dtype)


# ----------------------------------------------------------------------------
# Trilinear (align_corners=True) interpolation matrix for one axis.
# ----------------------------------------------------------------------------
def interp_matrix(in_size, out_size):
    if out_size == 1:
        src = jnp.zeros((1,), jnp.float32)
    else:
        src = jnp.arange(out_size, dtype=jnp.float32) * (
            float(in_size - 1) / float(out_size - 1))
    # guard against floor(x - eps) landing on the wrong integer pair
    snapped = jnp.round(src)
    src = jnp.where(jnp.abs(src - snapped) < 1e-6, snapped, src)
    i0 = jnp.clip(jnp.floor(src).astype(jnp.int32), 0, in_size - 1)
    i1 = jnp.clip(i0 + 1, 0, in_size - 1)
    w = src - i0.astype(jnp.float32)
    m = (jax.nn.one_hot(i0, in_size, dtype=jnp.float32) * (1.0 - w)[:, None]
         + jax.nn.one_hot(i1, in_size, dtype=jnp.float32) * w[:, None])
    return m  # (out_size, in_size)


# ----------------------------------------------------------------------------
# Do-tile selection: divisor of Do, multiple of 8 (or == Do) for legal tiling,
# within a VMEM budget, preferring >=2 tiles so v7x's 2 TensorCores get work.
# ----------------------------------------------------------------------------
def _pick_do_block(do_size, bytes_per_do_row, budget_bytes):
    cands = [t for t in range(do_size, 0, -1)
             if do_size % t == 0 and (t % 8 == 0 or t == do_size)]
    within = [t for t in cands if t * bytes_per_do_row <= budget_bytes]
    pool = within if within else cands
    multi = [t for t in pool if do_size // t >= 2]
    return (multi if multi else pool)[0]


# ----------------------------------------------------------------------------
# UnetDsv3 forward: x (N, Cin, D, H, W); weight (Cout, Cin, 1, 1, 1); bias (Cout,)
# ----------------------------------------------------------------------------
@functools.partial(jax.jit, static_argnames=("scale_factor",))
def unet_dsv3_forward(x, weight, bias, scale_factor):
    n, cin, d, h, w = x.shape
    cout = weight.shape[0]
    do = int(math.floor(d * scale_factor))
    ho = int(math.floor(h * scale_factor))
    wo = int(math.floor(w * scale_factor))

    # Interp matrices + folded operands (tiny; computed once per traced shape).
    md = interp_matrix(d, do)                  # (Do, D)
    mh = interp_matrix(h, ho)                  # (Ho, H)
    mw = interp_matrix(w, wo)                  # (Wo, W)
    w2 = weight.reshape(cout, cin).astype(jnp.float32)
    # kdm[c, do, ci*D + d] = Wconv[c, ci] * Md[do, d]
    kdm = jnp.einsum("ci,od->coid", w2, md).reshape(cout, do, cin * d)
    # khwt[h*W + w, ho*Wo + wo] = Mh[ho, h] * Mw[wo, w]
    khwt = jnp.einsum("oh,pw->hwop", mh, mw).reshape(h * w, ho * wo)
    bias3 = jnp.broadcast_to(
        bias.astype(jnp.float32).reshape(cout, 1, 1), (cout, 1, ho * wo))

    # Free (contiguous) reshape only — no XLA transposes anywhere.
    x2 = x.astype(jnp.float32).reshape(n, cin * d, h * w)

    per_do_bytes = (cout * ho * wo + cout * cin * d) * 4
    do_blk = _pick_do_block(do, per_do_bytes, budget_bytes=4 << 20)
    grid = (n, do // do_blk)

    out_flat = pl.pallas_call(
        _dsv_fused_kernel,
        out_shape=jax.ShapeDtypeStruct((n, cout, do, ho * wo), jnp.float32),
        grid_spec=pltpu.PrefetchScalarGridSpec(
            num_scalar_prefetch=0,
            grid=grid,
            in_specs=[
                pl.BlockSpec((1, cin * d, h * w), lambda i, j: (i, 0, 0)),
                pl.BlockSpec((cout, do_blk, cin * d), lambda i, j: (0, j, 0)),
                pl.BlockSpec((h * w, ho * wo), lambda i, j: (0, 0)),
                pl.BlockSpec((cout, 1, ho * wo), lambda i, j: (0, 0, 0)),
            ],
            out_specs=pl.BlockSpec((1, cout, do_blk, ho * wo),
                                   lambda i, j: (i, 0, j, 0)),
        ),
        compiler_params=pltpu.CompilerParams(
            dimension_semantics=("parallel", "parallel"),
            vmem_limit_bytes=32 * 1024 * 1024),
    )(x2, kdm, khwt, bias3)

    return out_flat.reshape(n, cout, do, ho, wo)   # NCDHW (PyTorch order)


# ----------------------------------------------------------------------------
# Pure-JAX reference (gather-based trilinear, align_corners=True)
# ----------------------------------------------------------------------------
def ref_forward(x, weight, bias, scale_factor):
    n, cin, d, h, w = x.shape
    cout = weight.shape[0]
    y = jnp.einsum("ncdhw,oc->nodhw", x, weight.reshape(cout, cin))
    y = y + bias[None, :, None, None, None]

    do = int(math.floor(d * scale_factor))
    ho = int(math.floor(h * scale_factor))
    wo = int(math.floor(w * scale_factor))

    def axis(in_s, out_s):
        if out_s == 1:
            src = jnp.zeros((1,), jnp.float32)
        else:
            src = jnp.arange(out_s, dtype=jnp.float32) * (
                float(in_s - 1) / float(out_s - 1))
        i0 = jnp.clip(jnp.floor(src).astype(jnp.int32), 0, in_s - 1)
        i1 = jnp.clip(i0 + 1, 0, in_s - 1)
        frac = src - i0.astype(jnp.float32)
        return i0, i1, frac

    d0, d1, fd = axis(d, do)
    h0, h1, fh = axis(h, ho)
    w0, w1, fw = axis(w, wo)

    def gather(di, hi, wi):
        return y[:, :, di[:, None, None], hi[None, :, None], wi[None, None, :]]

    wd0, wd1 = (1 - fd)[:, None, None], fd[:, None, None]
    wh0, wh1 = (1 - fh)[None, :, None], fh[None, :, None]
    ww0, ww1 = (1 - fw)[None, None, :], fw[None, None, :]

    out = (gather(d0, h0, w0) * wd0 * wh0 * ww0
           + gather(d0, h0, w1) * wd0 * wh0 * ww1
           + gather(d0, h1, w0) * wd0 * wh1 * ww0
           + gather(d0, h1, w1) * wd0 * wh1 * ww1
           + gather(d1, h0, w0) * wd1 * wh0 * ww0
           + gather(d1, h0, w1) * wd1 * wh0 * ww1
           + gather(d1, h1, w0) * wd1 * wh1 * ww0
           + gather(d1, h1, w1) * wd1 * wh1 * ww1)
    return out


# ----------------------------------------------------------------------------
if __name__ == "__main__":
    key = jax.random.PRNGKey(0)
    kx, kw, kb = jax.random.split(key, 3)

    N, C_IN, C_OUT = 2, 4, 4
    D = H = W = 8
    SCALE = 2

    x = jax.random.normal(kx, (N, C_IN, D, H, W), dtype=jnp.float32)
    weight = jax.random.normal(kw, (C_OUT, C_IN, 1, 1, 1), dtype=jnp.float32) * 0.1
    bias = jax.random.normal(kb, (C_OUT,), dtype=jnp.float32) * 0.1

    out = jax.block_until_ready(unet_dsv3_forward(x, weight, bias, SCALE))

    expected_shape = (N, C_OUT, D * SCALE, H * SCALE, W * SCALE)
    assert out.shape == expected_shape, (out.shape, expected_shape)

    ref = ref_forward(x, weight, bias, SCALE)
    assert jnp.allclose(out, ref, atol=1e-4, rtol=1e-4), float(
        jnp.max(jnp.abs(out - ref)))

    print("KERNEL_OK")
</pallas_src>

<mosaic_0001>
module attributes {stable_mosaic.version = 11 : i64} {
  func.func @_dsv_fused_kernel(%arg0: i32, %arg1: i32, %arg2: memref<1x32x64xf32, #tpu.memory_space<vmem>>, %arg3: memref<4x8x32xf32, #tpu.memory_space<vmem>>, %arg4: memref<64x256xf32, #tpu.memory_space<vmem>>, %arg5: memref<4x1x256xf32, #tpu.memory_space<vmem>>, %arg6: memref<1x4x8x256xf32, #tpu.memory_space<vmem>>) attributes {dimension_semantics = [#tpu.dimension_semantics<parallel>, #tpu.dimension_semantics<parallel>], iteration_bounds = array<i64: 2, 2>, scalar_prefetch = 0 : i64, scratch_operands = 0 : i64, tpu.core_type = #tpu.core_type<tc>, window_params = [{transform_indices = @transform_0, window_bounds = array<i64: 1, 32, 64>}, {transform_indices = @transform_1, window_bounds = array<i64: 4, 8, 32>}, {pipeline_mode = #tpu.pipeline_mode<synchronous>, transform_indices = @transform_2, window_bounds = array<i64: 64, 256>}, {pipeline_mode = #tpu.pipeline_mode<synchronous>, transform_indices = @transform_3, window_bounds = array<i64: 4, 1, 256>}, {transform_indices = @transform_4, window_bounds = array<i64: 1, 4, 8, 256>}]} {
    %c0 = arith.constant 0 : index
    %c0_0 = arith.constant 0 : index
    %c0_1 = arith.constant 0 : index
    %0 = vector.load %arg2[%c0, %c0_0, %c0_1] : memref<1x32x64xf32, #tpu.memory_space<vmem>>, vector<1x32x64xf32>
    %1 = vector.shape_cast %0 : vector<1x32x64xf32> to vector<32x64xf32>
    %c0_2 = arith.constant 0 : index
    %c0_3 = arith.constant 0 : index
    %c0_4 = arith.constant 0 : index
    %2 = vector.load %arg3[%c0_2, %c0_3, %c0_4] : memref<4x8x32xf32, #tpu.memory_space<vmem>>, vector<4x8x32xf32>
    %3 = vector.shape_cast %2 : vector<4x8x32xf32> to vector<32x32xf32>
    %cst = arith.constant dense<0.000000e+00> : vector<32x64xf32>
    %4 = tpu.matmul %3, %1, %cst {dimension_numbers = #tpu.dot_dimension_numbers<[1], [0], [0], [1], [0, 0, 1, 1], [], []>} : vector<32x32xf32>, vector<32x64xf32>, vector<32x64xf32> -> vector<32x64xf32>
    %c0_5 = arith.constant 0 : index
    %c0_6 = arith.constant 0 : index
    %5 = vector.load %arg4[%c0_5, %c0_6] : memref<64x256xf32, #tpu.memory_space<vmem>>, vector<64x256xf32>
    %cst_7 = arith.constant dense<0.000000e+00> : vector<32x256xf32>
    %6 = tpu.matmul %4, %5, %cst_7 {dimension_numbers = #tpu.dot_dimension_numbers<[1], [0], [0], [1], [0, 0, 1, 1], [], []>} : vector<32x64xf32>, vector<64x256xf32>, vector<32x256xf32> -> vector<32x256xf32>
    %7 = vector.shape_cast %6 : vector<32x256xf32> to vector<4x8x256xf32>
    %c0_8 = arith.constant 0 : index
    %c0_9 = arith.constant 0 : index
    %c0_10 = arith.constant 0 : index
    %8 = vector.load %arg5[%c0_8, %c0_9, %c0_10] : memref<4x1x256xf32, #tpu.memory_space<vmem>>, vector<4x1x256xf32>
    %9 = vector.broadcast %8 : vector<4x1x256xf32> to vector<4x8x256xf32>
    %10 = arith.addf %7, %9 : vector<4x8x256xf32>
    %c0_11 = arith.constant 0 : index
    %c0_12 = arith.constant 0 : index
    %c0_13 = arith.constant 0 : index
    %c0_14 = arith.constant 0 : index
    %11 = vector.load %arg6[%c0_11, %c0_12, %c0_13, %c0_14] : memref<1x4x8x256xf32, #tpu.memory_space<vmem>>, vector<1x4x8x256xf32>
    %12 = vector.shape_cast %11 : vector<1x4x8x256xf32> to vector<4x8x256xf32>
    %13 = vector.shape_cast %10 : vector<4x8x256xf32> to vector<1x4x8x256xf32>
    tpu.vector_store %arg6[%c0_11, %c0_12, %c0_13, %c0_14], %13 {strides = array<i32>} : memref<1x4x8x256xf32, #tpu.memory_space<vmem>>, vector<1x4x8x256xf32>,
    return
  }
  func.func @transform_0(%arg0: i32, %arg1: i32) -> (i32, i32, i32) {
    %c0_i32 = arith.constant 0 : i32
    %c0_i32_0 = arith.constant 0 : i32
    %c0_i32_1 = arith.constant 0 : i32
    return %arg0, %c0_i32, %c0_i32_0 : i32, i32, i32
  }
  func.func @transform_1(%arg0: i32, %arg1: i32) -> (i32, i32, i32) {
    %c0_i32 = arith.constant 0 : i32
    %c0_i32_0 = arith.constant 0 : i32
    %c0_i32_1 = arith.constant 0 : i32
    return %c0_i32, %arg1, %c0_i32_0 : i32, i32, i32
  }
  func.func @transform_2(%arg0: i32, %arg1: i32) -> (i32, i32) {
    %c0_i32 = arith.constant 0 : i32
    %c0_i32_0 = arith.constant 0 : i32
    %c0_i32_1 = arith.constant 0 : i32
    return %c0_i32, %c0_i32_0 : i32, i32
  }
  func.func @transform_3(%arg0: i32, %arg1: i32) -> (i32, i32, i32) {
    %c0_i32 = arith.constant 0 : i32
    %c0_i32_0 = arith.constant 0 : i32
    %c0_i32_1 = arith.constant 0 : i32
    %c0_i32_2 = arith.constant 0 : i32
    return %c0_i32, %c0_i32_0, %c0_i32_1 : i32, i32, i32
  }
  func.func @transform_4(%arg0: i32, %arg1: i32) -> (i32, i32, i32, i32) {
    %c0_i32 = arith.constant 0 : i32
    %c0_i32_0 = arith.constant 0 : i32
    %c0_i32_1 = arith.constant 0 : i32
    return %arg0, %c0_i32, %arg1, %c0_i32_0 : i32, i32, i32, i32
  }
}

</mosaic_0001>

<llo_original>
// kernel: unet_dsv3_forward.1
$region0: #{unet_dsv3_forward.1}
  #allocation0 [shape = 'u32[]', space=smem, size = 0x4, offset = 0x4, fixed_abs, tag = 'smem constant byte address 0x4 - core index']
  #allocation1 [shape = 'u32[144,128]{1,0:T(1,128)}', space=vmem, size = 0x12000, scoped, tag = 'internal scratch']
  %s0 = inlined_call_operand.vmem [shape: f32[2,32,64], index: 0, kind: input, shape index: {}]
  %s1 = inlined_call_operand.vmem [shape: f32[4,16,32], index: 1, kind: input, shape index: {}]
  %s2 = inlined_call_operand.vmem [shape: f32[64,256], index: 2, kind: input, shape index: {}]
  %s3 = inlined_call_operand.vmem [shape: f32[4,1,256], index: 3, kind: input, shape index: {}]
  %s4 = inlined_call_operand.vmem [shape: f32[2,4,16,256], index: 4, kind: output, shape index: {}]
  %s5 = sld [smem:[#allocation0]]
  $region106: #{unet_dsv3_forward.1} parent=0
    _
  %s7 = ssub.s32 1, %s5
  %s8 = scalar_select 0, %s7, %s5
  $region1: #{unet_dsv3_forward.1} parent=0
    #allocation2 [shape = 'u8[32768]{0}', space=vmem, size = 0x8000, scoped, tag = 'input window, operand 1']
    #allocation3 [shape = 'u8[65536]{0}', space=vmem, size = 0x10000, scoped, tag = 'output window, operand 0']
    loop: start=0, step=1, limit=6
    $region2: #{unet_dsv3_forward.1} parent=1 // loop_pre_header
      _
    $region3: #{unet_dsv3_forward.1} parent=1 // loop_header
      %s10 = sphi 0, %s14
      %p11 = scmp.ge.s32.totalorder %s10, 6
      %s17 = sphi 0, %s29
      %s18 = sphi 0, %s25
      %s19 = sphi 0, %s17
      %s20 = sphi 0, %s18
      %s21 = sphi 0, %s19
      %s22 = sphi 0, %s20
      %s32 = sphi 0, %s34
      %s35 = sphi 0, %s32
      %s36 = sphi 0, %s35
      %s52 = sphi 0, %s36
      %s58 = sphi 0, %s60
      %s61 = sphi 0, %s58
      %s62 = sphi 0, %s61
      %s78 = sphi 0, %s62
      %s82 = sphi 0, %s82
      %s84 = sphi 0, %s82
      %s85 = sphi 0, %s84
      %s99 = sphi 0, %s85
      %s103 = sphi 0, %s103
      %s105 = sphi 0, %s103
      %s106 = sphi 0, %s105
      %s120 = sphi 0, %s106
      %s128 = sphi 0, %s130
      %s131 = sphi 0, %s128
      %s132 = sphi 0, %s131
      %s148 = sphi 0, %s132
    $region4: #{unet_dsv3_forward.1} parent=1 // loop_header_branch
      %13 = sbr.rel (%p11) target = $region8
    $region5: #{unet_dsv3_forward.1} parent=1 // loop_body
      %s15 = ssub.s32 %s10, 1
      %s16 = ssub.s32 %s10, 2
      %s23 = sadd.s32 1, %s18
      %p24 = scmp.ge.s32.totalorder %s23, 2
      %s25 = scalar_select %p24, 0, %s23
      %s26 = sadd.s32 1, %s17
      %s27 = scalar_select %p24, %s26, %s17
      %p28 = scmp.ge.s32.totalorder %s27, 2
      %s29 = scalar_select %p28, 0, %s27
      %s30 = ssub.s32 %s17, %s29
      %p31 = scmp.eq.s32.totalorder %s30, 0
      %s33 = sadd.s32 %s32, 1
      %s34 = scalar_select %p31, %s32, %s33
      %p37 = pneg %p31
      %p38 = scmp.eq.s32.totalorder %s10, 3
      %p39 = por %p37, %p38
      %p40 = scmp.ne.s32.totalorder %s32, %s35
      %p41 = scmp.eq.s32.totalorder %s10, 0
      %p42 = por %p40, %p41
      %p43 = scmp.ne.s32.totalorder %s32, %s35
      %p44 = scmp.eq.s32.totalorder %s15, 3
      %p45 = por %p43, %p44
      %p46 = scmp.ne.s32.totalorder %s35, %s36
      %p47 = scmp.eq.s32.totalorder %s15, 0
      %p48 = por %p46, %p47
      %p49 = scmp.ne.s32.totalorder %s35, %s36
      %p50 = scmp.eq.s32.totalorder %s16, 3
      %p51 = por %p49, %p50
      %p53 = scmp.ne.s32.totalorder %s36, %s52
      %p54 = scmp.eq.s32.totalorder %s16, 0
      %p55 = por %p53, %p54
      %s56 = ssub.s32 %s18, %s25
      %p57 = scmp.eq.s32.totalorder %s56, 0
      %s59 = sadd.s32 %s58, 1
      %s60 = scalar_select %p57, %s58, %s59
      %p63 = pneg %p57
      %p64 = scmp.eq.s32.totalorder %s10, 3
      %p65 = por %p63, %p64
      %p66 = scmp.ne.s32.totalorder %s58, %s61
      %p67 = scmp.eq.s32.totalorder %s10, 0
      %p68 = por %p66, %p67
      %p69 = scmp.ne.s32.totalorder %s58, %s61
      %p70 = scmp.eq.s32.totalorder %s15, 3
      %p71 = por %p69, %p70
      %p72 = scmp.ne.s32.totalorder %s61, %s62
      %p73 = scmp.eq.s32.totalorder %s15, 0
      %p74 = por %p72, %p73
      %p75 = scmp.ne.s32.totalorder %s61, %s62
      %p76 = scmp.eq.s32.totalorder %s16, 3
      %p77 = por %p75, %p76
      %p79 = scmp.ne.s32.totalorder %s62, %s78
      %p80 = scmp.eq.s32.totalorder %s16, 0
      %p81 = por %p79, %p80
      %s83 = sadd.s32 %s82, 1
      %p86 = scmp.eq.s32.totalorder %s10, 3
      %p87 = scmp.ne.s32.totalorder %s82, %s84
      %p88 = scmp.eq.s32.totalorder %s10, 0
      %p89 = por %p87, %p88
      %p90 = scmp.ne.s32.totalorder %s82, %s84
      %p91 = scmp.eq.s32.totalorder %s15, 3
      %p92 = por %p90, %p91
      %p93 = scmp.ne.s32.totalorder %s84, %s85
      %p94 = scmp.eq.s32.totalorder %s15, 0
      %p95 = por %p93, %p94
      %p96 = scmp.ne.s32.totalorder %s84, %s85
      %p97 = scmp.eq.s32.totalorder %s16, 3
      %p98 = por %p96, %p97
      %p100 = scmp.ne.s32.totalorder %s85, %s99
      %p101 = scmp.eq.s32.totalorder %s16, 0
      %p102 = por %p100, %p101
      %s104 = sadd.s32 %s103, 1
      %p107 = scmp.eq.s32.totalorder %s10, 3
      %p108 = scmp.ne.s32.totalorder %s103, %s105
      %p109 = scmp.eq.s32.totalorder %s10, 0
      %p110 = por %p108, %p109
      %p111 = scmp.ne.s32.totalorder %s103, %s105
      %p112 = scmp.eq.s32.totalorder %s15, 3
      %p113 = por %p111, %p112
      %p114 = scmp.ne.s32.totalorder %s105, %s106
      %p115 = scmp.eq.s32.totalorder %s15, 0
      %p116 = por %p114, %p115
      %p117 = scmp.ne.s32.totalorder %s105, %s106
      %p118 = scmp.eq.s32.totalorder %s16, 3
      %p119 = por %p117, %p118
      %p121 = scmp.ne.s32.totalorder %s106, %s120
      %p122 = scmp.eq.s32.totalorder %s16, 0
      %p123 = por %p121, %p122
      %s124 = ssub.s32 %s17, %s29
      %s125 = ssub.s32 %s18, %s25
      %s126 = sor.u32 %s124, %s125
      %p127 = scmp.eq.s32.totalorder %s126, 0
      %s129 = sadd.s32 %s128, 1
      %s130 = scalar_select %p127, %s128, %s129
      %p133 = pneg %p127
      %p134 = scmp.eq.s32.totalorder %s10, 3
      %p135 = por %p133, %p134
      %p136 = scmp.ne.s32.totalorder %s128, %s131
      %p137 = scmp.eq.s32.totalorder %s10, 0
      %p138 = por %p136, %p137
      %p139 = scmp.ne.s32.totalorder %s128, %s131
      %p140 = scmp.eq.s32.totalorder %s15, 3
      %p141 = por %p139, %p140
      %p142 = scmp.ne.s32.totalorder %s131, %s132
      %p143 = scmp.eq.s32.totalorder %s15, 0
      %p144 = por %p142, %p143
      %p145 = scmp.ne.s32.totalorder %s131, %s132
      %p146 = scmp.eq.s32.totalorder %s16, 3
      %p147 = por %p145, %p146
      %p149 = scmp.ne.s32.totalorder %s132, %s148
      %p150 = scmp.eq.s32.totalorder %s16, 0
      %p151 = por %p149, %p150
      %p152 = scmp.le.s32.totalorder 1, %s10
      %p153 = scmp.lt.s32.totalorder %s10, 5
      %p154 = pnand %p152, %p153
      %p155 = pneg %p154
      // Predicated region
      $region9: #{unet_dsv3_forward.1} parent=5 // pred_check
        _
      $region10: #{unet_dsv3_forward.1} parent=5 // pred_check_branch
        %157 = sbr.rel (%p154) target = $region12
      $region11: #{unet_dsv3_forward.1} parent=5 // pred_region
        %s158 = ssub.s32 %s10, 1
        // Predicated region
        $region13: #{unet_dsv3_forward.1} parent=11 // pred_check
          %p159 = pneg %p95
        $region14: #{unet_dsv3_forward.1} parent=11 // pred_check_branch
          %161 = sbr.rel (%p159) target = $region16
        $region15: #{unet_dsv3_forward.1} parent=11 // pred_region
          _
        $region16: #{unet_dsv3_forward.1} parent=11 // pred_fallthru
          _
        // Predicated region
        $region17: #{unet_dsv3_forward.1} parent=11 // pred_check
          %p162 = pneg %p116
        $region18: #{unet_dsv3_forward.1} parent=11 // pred_check_branch
          %164 = sbr.rel (%p162) target = $region20
        $region19: #{unet_dsv3_forward.1} parent=11 // pred_region
          _
        $region20: #{unet_dsv3_forward.1} parent=11 // pred_fallthru
          _
      $region12: #{unet_dsv3_forward.1} parent=5 // pred_fallthru
        _
      %p165 = scmp.lt.s32.totalorder %s10, 4
      // Predicated region
      $region21: #{unet_dsv3_forward.1} parent=5 // pred_check
        %p166 = pneg %p165
      $region22: #{unet_dsv3_forward.1} parent=5 // pred_check_branch
        %168 = sbr.rel (%p166) target = $region24
      $region23: #{unet_dsv3_forward.1} parent=5 // pred_region
        // Predicated region
        $region25: #{unet_dsv3_forward.1} parent=23 // pred_check
          %p169 = pneg %p42
        $region26: #{unet_dsv3_forward.1} parent=23 // pred_check_branch
          %171 = sbr.rel (%p169) target = $region28
        $region27: #{unet_dsv3_forward.1} parent=23 // pred_region
          %p172 = scmp.lt.s32.totalorder %s17, 1
          %s173 = scalar_select %p172, %s17, 1
          %s174 = smul.addr %s173, 4
          %s175 = smul.addr %s174, 8
          %s176 = scalar_lea.vmem %s0, %s175
        $region28: #{unet_dsv3_forward.1} parent=23 // pred_fallthru
          _
        // Predicated region
        $region29: #{unet_dsv3_forward.1} parent=23 // pred_check
          %p177 = pneg %p68
        $region30: #{unet_dsv3_forward.1} parent=23 // pred_check_branch
          %179 = sbr.rel (%p177) target = $region32
        $region31: #{unet_dsv3_forward.1} parent=23 // pred_region
          %s180 = sand.u32 %s58, 1
          %s181 = sand.u32 %s58, 1
          %s182 = smul.addr %s181, 32
          %s183 = scalar_lea.vmem [#allocation2], %s182
          %s184 = smul.addr %s18, 8
          %s185 = scalar_lea.vmem %s1, %s184
          // Predicated region
          $region33: #{unet_dsv3_forward.1} parent=31 // pred_check
            _
          $region34: #{unet_dsv3_forward.1} parent=31 // pred_check_branch
            %187 = sbr.rel (0) target = $region36
          $region35: #{unet_dsv3_forward.1} parent=31 // pred_region
            // Predicated region
            $region37: #{unet_dsv3_forward.1} parent=35 // pred_check
              _
            $region38: #{unet_dsv3_forward.1} parent=35 // pred_check_branch
              %189 = sbr.rel (0) target = $region40
            $region39: #{unet_dsv3_forward.1} parent=35 // pred_region
              // Predicated region
              $region52: #{unet_dsv3_forward.1} parent=39 // pred_check
                _
              $region53: #{unet_dsv3_forward.1} parent=39 // pred_check_branch
                %210 = sbr.rel (0) target = $region55
              $region54: #{unet_dsv3_forward.1} parent=39 // pred_region
                loop: start=0, step=1, limit=1
                $region56: #{unet_dsv3_forward.1} parent=54 // loop_pre_header
                  _
                $region57: #{unet_dsv3_forward.1} parent=54 // loop_header
                  %s212 = sphi 0, %s216
                  %p213 = scmp.ge.s32.totalorder %s212, 1
                  %s217 = sphi %s185, %s185
                  %s218 = sphi %s183, %s183
                $region58: #{unet_dsv3_forward.1} parent=54 // loop_header_branch
                  %215 = sbr.rel (%p213) target = $region62
                $region59: #{unet_dsv3_forward.1} parent=54 // loop_body
                  %v219 = vld [vmem:[%s217] sm:$0xff]
                  %220 = vst [vmem:[%s218] sm:$0xff] %v219
                  %v221 = vld [vmem:[%s217 + $0x10] sm:$0xff]
                  %222 = vst [vmem:[%s218 + $0x8] sm:$0xff] %v221
                  %v223 = vld [vmem:[%s217 + $0x20] sm:$0xff]
                  %224 = vst [vmem:[%s218 + $0x10] sm:$0xff] %v223
                  %v225 = vld [vmem:[%s217 + $0x30] sm:$0xff]
                  %226 = vst [vmem:[%s218 + $0x18] sm:$0xff] %v225
                $region60: #{unet_dsv3_forward.1} parent=54 // loop_footer
                  %s216 = sadd.s32 1, %s212
                $region61: #{unet_dsv3_forward.1} parent=54 // loop_footer_branch
                  %211 = sbr.rel target = $region57
                $region62: #{unet_dsv3_forward.1} parent=54 // loop_exit
                  _
              $region55: #{unet_dsv3_forward.1} parent=39 // pred_fallthru
                _
              // Predicated region
              $region63: #{unet_dsv3_forward.1} parent=39 // pred_check
                _
              $region64: #{unet_dsv3_forward.1} parent=39 // pred_check_branch
                %228 = sbr.rel target = $region66
              $region65: #{unet_dsv3_forward.1} parent=39 // pred_region
                _
              $region66: #{unet_dsv3_forward.1} parent=39 // pred_fallthru
                _
            $region40: #{unet_dsv3_forward.1} parent=35 // pred_fallthru
              _
            // Predicated region
            $region41: #{unet_dsv3_forward.1} parent=35 // pred_check
              _
            $region42: #{unet_dsv3_forward.1} parent=35 // pred_check_branch
              %191 = sbr.rel target = $region44
            $region43: #{unet_dsv3_forward.1} parent=35 // pred_region
              loop: start=0, step=1, limit=1
              $region45: #{unet_dsv3_forward.1} parent=43 // loop_pre_header
                _
              $region46: #{unet_dsv3_forward.1} parent=43 // loop_header
                %s194 = sphi 0, %s198
                %p195 = scmp.ge.s32.totalorder %s194, 1
                %s199 = sphi %s185, %s185
                %s200 = sphi %s183, %s183
              $region47: #{unet_dsv3_forward.1} parent=43 // loop_header_branch
                %197 = sbr.rel (%p195) target = $region51
              $region48: #{unet_dsv3_forward.1} parent=43 // loop_body
                %v201 = vld [vmem:[%s199] sm:$0xff]
                %202 = vst [vmem:[%s200] sm:$0xff] %v201
                %v203 = vld [vmem:[%s199 + $0x10] sm:$0xff]
                %204 = vst [vmem:[%s200 + $0x8] sm:$0xff] %v203
                %v205 = vld [vmem:[%s199 + $0x20] sm:$0xff]
                %206 = vst [vmem:[%s200 + $0x10] sm:$0xff] %v205
                %v207 = vld [vmem:[%s199 + $0x30] sm:$0xff]
                %208 = vst [vmem:[%s200 + $0x18] sm:$0xff] %v207
              $region49: #{unet_dsv3_forward.1} parent=43 // loop_footer
                %s198 = sadd.s32 1, %s194
              $region50: #{unet_dsv3_forward.1} parent=43 // loop_footer_branch
                %193 = sbr.rel target = $region46
              $region51: #{unet_dsv3_forward.1} parent=43 // loop_exit
                _
            $region44: #{unet_dsv3_forward.1} parent=35 // pred_fallthru
              _
          $region36: #{unet_dsv3_forward.1} parent=31 // pred_fallthru
            _
          %229 = vnop
        $region32: #{unet_dsv3_forward.1} parent=23 // pred_fallthru
          _
      $region24: #{unet_dsv3_forward.1} parent=5 // pred_fallthru
        _
      %p230 = scmp.le.s32.totalorder 1, %s10
      %p231 = scmp.lt.s32.totalorder %s10, 5
      %p232 = pnand %p230, %p231
      %p233 = pneg %p232
      // Predicated region
      $region67: #{unet_dsv3_forward.1} parent=5 // pred_check
        _
      $region68: #{unet_dsv3_forward.1} parent=5 // pred_check_branch
        %235 = sbr.rel (%p232) target = $region70
      $region69: #{unet_dsv3_forward.1} parent=5 // pred_region
        %s236 = ssub.s32 %s10, 1
        %s237 = sand.u32 %s61, 1
        %s238 = sand.u32 %s61, 1
        %s239 = smul.addr %s238, 32
        %s240 = scalar_lea.vmem [#allocation2], %s239
        // Predicated region
        $region71: #{unet_dsv3_forward.1} parent=69 // pred_check
          %p241 = pneg %p74
        $region72: #{unet_dsv3_forward.1} parent=69 // pred_check_branch
          %243 = sbr.rel (%p241) target = $region74
        $region73: #{unet_dsv3_forward.1} parent=69 // pred_region
          _
        $region74: #{unet_dsv3_forward.1} parent=69 // pred_fallthru
          _
        %p244 = scmp.lt.s32.totalorder %s19, 1
        %s245 = scalar_select %p244, %s19, 1
        %s246 = smul.addr %s245, 4
        %s247 = smul.addr %s246, 8
        %s248 = scalar_lea.vmem %s0, %s247
        %p249 = pneg %p48
        %p250 = pneg %p45
        %s251 = sand.u32 %s61, 1
        %s252 = sand.u32 %s61, 1
        %s253 = smul.addr %s252, 32
        %s254 = scalar_lea.vmem [#allocation2], %s253
        %p255 = pneg %p74
        %p256 = pneg %p71
        %p257 = pneg %p95
        %p258 = pneg %p92
        %p259 = pneg %p116
        %p260 = pneg %p113
        %p261 = pneg %p144
        %p262 = pneg %p141
        %s263 = sand.u32 %s131, 1
        %s264 = sand.u32 %s131, 1
        %s265 = smul.addr %s264, 64
        %s266 = scalar_lea.vmem [#allocation3], %s265
        %p267 = scmp.lt.s32.totalorder %s19, 1
        %s268 = scalar_select %p267, %s19, 1
        %s269 = smul.addr %s268, 4
        %s270 = smul.addr %s269, 8
        %s271 = scalar_lea.vmem %s0, %s270
        %v272 = vld [vmem:[%s271] sm:$0xff]
        %v273 = vld [vmem:[%s271 + $0x8] sm:$0xff]
        %v274 = vld [vmem:[%s271 + $0x10] sm:$0xff]
        %v275 = vld [vmem:[%s271 + $0x18] sm:$0xff]
        %v276 = vld [vmem:[%s240] sm:$0xff]
        %v277 = vld [vmem:[%s240 + $0x8] sm:$0xff]
        %v278 = vld [vmem:[%s240 + $0x10] sm:$0xff]
        %v279 = vld [vmem:[%s240 + $0x18] sm:$0xff]
        %vm280 = vcmask 261120
        %v282 = vsel %vm280, %v276, 0
        %v285 = vsel %vm280, %v277, 0
        %v288 = vsel %vm280, %v278, 0
        %v291 = vsel %vm280, %v279, 0
        %293 = vmatprep.subr.mxu0 0.0
        %294 = vmatpush1.msra.mxu0 %v272
        %295 = vmatprep.subr.mxu0 0.0
        %296 = vmatpush1.msra.mxu0 %v273
        %297 = vmatprep.subr.mxu0 0.0
        %298 = vmatpush1.msra.mxu0 %v274
        %299 = vmatprep.subr.mxu0 0.0
        %300 = vmatpush1.msra.mxu0 %v275
        %301 = vmatprep.subr.mxu0 0.0
        %302 = vmatpush1.msra.mxu0 0.0
        %303 = vmatprep.subr.mxu0 0.0
        %304 = vmatpush1.msra.mxu0 0.0
        %305 = vmatprep.subr.mxu0 0.0
        %306 = vmatpush1.msra.mxu0 0.0
        %307 = vmatprep.subr.mxu0 0.0
        %308 = vmatpush1.msra.mxu0 0.0
        %309 = vmatprep.subr.mxu0 0.0
        %310 = vmatpush1.msra.mxu0 0.0
        %311 = vmatprep.subr.mxu0 0.0
        %312 = vmatpush1.msra.mxu0 0.0
        %313 = vmatprep.subr.mxu0 0.0
        %314 = vmatpush1.msra.mxu0 0.0
        %315 = vmatprep.subr.mxu0 0.0
        %316 = vmatpush1.msra.mxu0 0.0
        %317 = vmatprep.subr.mxu0 0.0
        %318 = vmatpush1.msra.mxu0 0.0
        %319 = vmatprep.subr.mxu0 0.0
        %320 = vmatpush1.msra.mxu0 0.0
        %321 = vmatprep.subr.mxu0 0.0
        %322 = vmatpush1.msra.mxu0 0.0
        %323 = vmatprep.subr.mxu0 0.0
        %324 = vmatpush1.msra.mxu0 0.0
        %325 = vmatprep.subr.mxu0 0.0
        %326 = vmatpush1.msra.mxu0 0.0
        %327 = vmatprep.subr.mxu0 0.0
        %328 = vmatpush1.msra.mxu0 0.0
        %329 = vmatprep.subr.mxu0 0.0
        %330 = vmatpush1.msra.mxu0 0.0
        %331 = vmatprep.subr.mxu0 0.0
        %332 = vmatpush1.msra.mxu0 0.0
        %333 = vmatprep.subr.mxu0 0.0
        %334 = vmatpush1.msra.mxu0 0.0
        %335 = vmatprep.subr.mxu0 0.0
        %336 = vmatpush1.msra.mxu0 0.0
        %337 = vmatprep.subr.mxu0 0.0
        %338 = vmatpush1.msra.mxu0 0.0
        %339 = vmatprep.subr.mxu0 0.0
        %340 = vmatpush1.msra.mxu0 0.0
        %341 = vmatprep.subr.mxu0 0.0
        %342 = vmatpush1.msra.mxu0 0.0
        %343 = vmatprep.subr.mxu0 0.0
        %344 = vmatpush1.msra.mxu0 0.0
        %345 = vmatprep.subr.mxu0 0.0
        %346 = vmatpush1.msra.mxu0 0.0
        %347 = vmatprep.subr.mxu0 0.0
        %348 = vmatpush1.msra.mxu0 0.0
        %349 = vmatprep.subr.mxu0 0.0
        %350 = vmatpush1.msra.mxu0 0.0
        %351 = vmatprep.subr.mxu0 0.0
        %352 = vmatpush1.msra.mxu0 0.0
        %353 = vmatprep.subr.mxu0 0.0
        %354 = vmatpush1.msra.mxu0 0.0
        %355 = vmatprep.subr.mxu0 0.0
        %356 = vmatpush1.msra.mxu0 0.0
        %357 = vmatprep.mubr.f32.mxu0 0.0
        %358 = vmatmul.mubr.f32.gmra.mrb[0].mxu0 %v282
        %v359 = vpop.f32.mrb[0].mxu0
        %v360 = vadd.f32 0.0, %v359
        %v361 = vpop.f32.mrb[0].mxu0
        %362 = vmatprep.mubr.f32.mxu0 0.0
        %363 = vmatmul.mubr.f32.gmra.mrb[0].mxu0 %v285
        %v364 = vpop.f32.mrb[0].mxu0
        %v365 = vadd.f32 0.0, %v364
        %v366 = vpop.f32.mrb[0].mxu0
        %367 = vmatprep.mubr.f32.mxu0 0.0
        %368 = vmatmul.mubr.f32.gmra.mrb[0].mxu0 %v288
        %v369 = vpop.f32.mrb[0].mxu0
        %v370 = vadd.f32 0.0, %v369
        %v371 = vpop.f32.mrb[0].mxu0
        %372 = vmatprep.mubr.f32.mxu0 0.0
        %373 = vmatmul.mubr.f32.gmra.mrb[0].mxu0 %v291
        %v374 = vpop.f32.mrb[0].mxu0
        %v375 = vadd.f32 0.0, %v374
        %v376 = vpop.f32.mrb[0].mxu0
        %377 = vdwg.mxu0
        %v378 = vld [vmem:[%s2] sm:$0xff]
        %v379 = vld [vmem:[%s2 + $0x8] sm:$0xff]
        %v380 = vld [vmem:[%s2 + $0x10] sm:$0xff]
        %v381 = vld [vmem:[%s2 + $0x18] sm:$0xff]
        %v382 = vld [vmem:[%s2 + $0x20] sm:$0xff]
        %v383 = vld [vmem:[%s2 + $0x28] sm:$0xff]
        %v384 = vld [vmem:[%s2 + $0x30] sm:$0xff]
        %v385 = vld [vmem:[%s2 + $0x38] sm:$0xff]
        %v386 = vld [vmem:[%s2 + $0x40] sm:$0xff]
        %v387 = vld [vmem:[%s2 + $0x48] sm:$0xff]
        %v388 = vld [vmem:[%s2 + $0x50] sm:$0xff]
        %v389 = vld [vmem:[%s2 + $0x58] sm:$0xff]
        %v390 = vld [vmem:[%s2 + $0x60] sm:$0xff]
        %v391 = vld [vmem:[%s2 + $0x68] sm:$0xff]
        %v392 = vld [vmem:[%s2 + $0x70] sm:$0xff]
        %v393 = vld [vmem:[%s2 + $0x78] sm:$0xff]
        %vm394 = vcmask 523264
        %v396 = vsel %vm394, %v360, 0
        %v399 = vsel %vm394, %v365, 0
        %v402 = vsel %vm394, %v370, 0
        %v405 = vsel %vm394, %v375, 0
        %407 = vmatprep.subr.mxu0 %v379
        %408 = vmatpush1.msra.mxu0 %v378
        %409 = vmatprep.subr.mxu0 %v381
        %410 = vmatpush1.msra.mxu0 %v380
        %411 = vmatprep.subr.mxu0 %v383
        %412 = vmatpush1.msra.mxu0 %v382
        %413 = vmatprep.subr.mxu0 %v385
        %414 = vmatpush1.msra.mxu0 %v384
        %415 = vmatprep.subr.mxu0 %v387
        %416 = vmatpush1.msra.mxu0 %v386
        %417 = vmatprep.subr.mxu0 %v389
        %418 = vmatpush1.msra.mxu0 %v388
        %419 = vmatprep.subr.mxu0 %v391
        %420 = vmatpush1.msra.mxu0 %v390
        %421 = vmatprep.subr.mxu0 %v393
        %422 = vmatpush1.msra.mxu0 %v392
        %423 = vmatprep.subr.mxu0 0.0
        %424 = vmatpush1.msra.mxu0 0.0
        %425 = vmatprep.subr.mxu0 0.0
        %426 = vmatpush1.msra.mxu0 0.0
        %427 = vmatprep.subr.mxu0 0.0
        %428 = vmatpush1.msra.mxu0 0.0
        %429 = vmatprep.subr.mxu0 0.0
        %430 = vmatpush1.msra.mxu0 0.0
        %431 = vmatprep.subr.mxu0 0.0
        %432 = vmatpush1.msra.mxu0 0.0
        %433 = vmatprep.subr.mxu0 0.0
        %434 = vmatpush1.msra.mxu0 0.0
        %435 = vmatprep.subr.mxu0 0.0
        %436 = vmatpush1.msra.mxu0 0.0
        %437 = vmatprep.subr.mxu0 0.0
        %438 = vmatpush1.msra.mxu0 0.0
        %439 = vmatprep.subr.mxu0 0.0
        %440 = vmatpush1.msra.mxu0 0.0
        %441 = vmatprep.subr.mxu0 0.0
        %442 = vmatpush1.msra.mxu0 0.0
        %443 = vmatprep.subr.mxu0 0.0
        %444 = vmatpush1.msra.mxu0 0.0
        %445 = vmatprep.subr.mxu0 0.0
        %446 = vmatpush1.msra.mxu0 0.0
        %447 = vmatprep.subr.mxu0 0.0
        %448 = vmatpush1.msra.mxu0 0.0
        %449 = vmatprep.subr.mxu0 0.0
        %450 = vmatpush1.msra.mxu0 0.0
        %451 = vmatprep.subr.mxu0 0.0
        %452 = vmatpush1.msra.mxu0 0.0
        %453 = vmatprep.subr.mxu0 0.0
        %454 = vmatpush1.msra.mxu0 0.0
        %455 = vmatprep.subr.mxu0 0.0
        %456 = vmatpush1.msra.mxu0 0.0
        %457 = vmatprep.subr.mxu0 0.0
        %458 = vmatpush1.msra.mxu0 0.0
        %459 = vmatprep.subr.mxu0 0.0
        %460 = vmatpush1.msra.mxu0 0.0
        %461 = vmatprep.subr.mxu0 0.0
        %462 = vmatpush1.msra.mxu0 0.0
        %463 = vmatprep.subr.mxu0 0.0
        %464 = vmatpush1.msra.mxu0 0.0
        %465 = vmatprep.subr.mxu0 0.0
        %466 = vmatpush1.msra.mxu0 0.0
        %467 = vmatprep.subr.mxu0 0.0
        %468 = vmatpush1.msra.mxu0 0.0
        %469 = vmatprep.subr.mxu0 0.0
        %470 = vmatpush1.msra.mxu0 0.0
        %471 = vmatprep.mubr.f32.mxu0 0.0
        %472 = vmatmul.mubr.f32.gmra.mrb[0].mxu0 %v396
        %v473 = vpop.f32.mrb[0].mxu0
        %v474 = vadd.f32 0.0, %v473
        %v475 = vpop.f32.mrb[0].mxu0
        %v476 = vadd.f32 0.0, %v475
        %477 = vmatprep.mubr.f32.mxu0 0.0
        %478 = vmatmul.mubr.f32.gmra.mrb[0].mxu0 %v399
        %v479 = vpop.f32.mrb[0].mxu0
        %v480 = vadd.f32 0.0, %v479
        %v481 = vpop.f32.mrb[0].mxu0
        %v482 = vadd.f32 0.0, %v481
        %483 = vmatprep.mubr.f32.mxu0 0.0
        %484 = vmatmul.mubr.f32.gmra.mrb[0].mxu0 %v402
        %v485 = vpop.f32.mrb[0].mxu0
        %v486 = vadd.f32 0.0, %v485
        %v487 = vpop.f32.mrb[0].mxu0
        %v488 = vadd.f32 0.0, %v487
        %489 = vmatprep.mubr.f32.mxu0 0.0
        %490 = vmatmul.mubr.f32.gmra.mrb[0].mxu0 %v405
        %v491 = vpop.f32.mrb[0].mxu0
        %v492 = vadd.f32 0.0, %v491
        %v493 = vpop.f32.mrb[0].mxu0
        %v494 = vadd.f32 0.0, %v493
        %495 = vdwg.mxu0
        %v496 = vld [vmem:[%s3] sm:$0x3]
        %v497 = vld [vmem:[%s3 + $0x2] sm:$0x3]
        %v498 = vld [vmem:[%s3 + $0x4] sm:$0x3]
        %v499 = vld [vmem:[%s3 + $0x6] sm:$0x3]
        %v504 = vlaneseq
        %v505 = vshrl.u32 %v504, 7
        %v506 = vsub.s32 0, %v505
        %v507 = vrot.slane %v496, %v506
        %v508 = vlaneseq
        %v509 = vshrl.u32 %v508, 7
        %v510 = vsub.s32 1, %v509
        %v511 = vrot.slane %v496, %v510
        %v512 = vlaneseq
        %v513 = vshrl.u32 %v512, 7
        %v514 = vsub.s32 0, %v513
        %v515 = vrot.slane %v497, %v514
        %v516 = vlaneseq
        %v517 = vshrl.u32 %v516, 7
        %v518 = vsub.s32 1, %v517
        %v519 = vrot.slane %v497, %v518
        %v520 = vlaneseq
        %v521 = vshrl.u32 %v520, 7
        %v522 = vsub.s32 0, %v521
        %v523 = vrot.slane %v498, %v522
        %v524 = vlaneseq
        %v525 = vshrl.u32 %v524, 7
        %v526 = vsub.s32 1, %v525
        %v527 = vrot.slane %v498, %v526
        %v528 = vlaneseq
        %v529 = vshrl.u32 %v528, 7
        %v530 = vsub.s32 0, %v529
        %v531 = vrot.slane %v499, %v530
        %v532 = vlaneseq
        %v533 = vshrl.u32 %v532, 7
        %v534 = vsub.s32 1, %v533
        %v535 = vrot.slane %v499, %v534
        %v544 = vadd.f32 %v474, %v507
        %v545 = vadd.f32 %v476, %v511
        %v546 = vadd.f32 %v480, %v515
        %v547 = vadd.f32 %v482, %v519
        %v548 = vadd.f32 %v486, %v523
        %v549 = vadd.f32 %v488, %v527
        %v550 = vadd.f32 %v492, %v531
        %v551 = vadd.f32 %v494, %v535
        %552 = vst [vmem:[%s266] sm:$0xff] %v544
        %553 = vst [vmem:[%s266 + $0x8] sm:$0xff] %v545
        %554 = vst [vmem:[%s266 + $0x10] sm:$0xff] %v546
        %555 = vst [vmem:[%s266 + $0x18] sm:$0xff] %v547
        %556 = vst [vmem:[%s266 + $0x20] sm:$0xff] %v548
        %557 = vst [vmem:[%s266 + $0x28] sm:$0xff] %v549
        %558 = vst [vmem:[%s266 + $0x30] sm:$0xff] %v550
        %559 = vst [vmem:[%s266 + $0x38] sm:$0xff] %v551
        %s560 = sand.u32 %s131, 1
        %s561 = sand.u32 %s131, 1
        %s562 = smul.addr %s561, 64
        %s563 = scalar_lea.vmem [#allocation3], %s562
        // Predicated region
        $region75: #{unet_dsv3_forward.1} parent=69 // pred_check
          %p564 = pneg %p141
        $region76: #{unet_dsv3_forward.1} parent=69 // pred_check_branch
          %566 = sbr.rel (%p564) target = $region78
        $region77: #{unet_dsv3_forward.1} parent=69 // pred_region
          %s567 = smul.addr %s20, 2
          %s568 = smul.addr %s19, 16
          %s569 = sadd.s32 %s567, %s568
          %s570 = smul.addr %s569, 8
          %s571 = scalar_lea.vmem %s4, %s570
          // Predicated region
          $region79: #{unet_dsv3_forward.1} parent=77 // pred_check
            _
          $region80: #{unet_dsv3_forward.1} parent=77 // pred_check_branch
            %573 = sbr.rel (0) target = $region82
          $region81: #{unet_dsv3_forward.1} parent=77 // pred_region
            // Predicated region
            $region83: #{unet_dsv3_forward.1} parent=81 // pred_check
              _
            $region84: #{unet_dsv3_forward.1} parent=81 // pred_check_branch
              %575 = sbr.rel (0) target = $region86
            $region85: #{unet_dsv3_forward.1} parent=81 // pred_region
              loop: start=0, step=1, limit=1
              $region87: #{unet_dsv3_forward.1} parent=85 // loop_pre_header
                _
              $region88: #{unet_dsv3_forward.1} parent=85 // loop_header
                %s577 = sphi 0, %s581
                %p578 = scmp.ge.s32.totalorder %s577, 1
                %s582 = sphi %s563, %s563
                %s583 = sphi %s571, %s571
              $region89: #{unet_dsv3_forward.1} parent=85 // loop_header_branch
                %580 = sbr.rel (%p578) target = $region93
              $region90: #{unet_dsv3_forward.1} parent=85 // loop_body
                %v584 = vld [vmem:[%s582] sm:$0xff]
                %585 = vst [vmem:[%s583] sm:$0xff] %v584
                %v586 = vld [vmem:[%s582 + $0x8] sm:$0xff]
                %587 = vst [vmem:[%s583 + $0x8] sm:$0xff] %v586
                %v588 = vld [vmem:[%s582 + $0x10] sm:$0xff]
                %589 = vst [vmem:[%s583 + $0x20] sm:$0xff] %v588
                %v590 = vld [vmem:[%s582 + $0x18] sm:$0xff]
                %591 = vst [vmem:[%s583 + $0x28] sm:$0xff] %v590
                %v592 = vld [vmem:[%s582 + $0x20] sm:$0xff]
                %593 = vst [vmem:[%s583 + $0x40] sm:$0xff] %v592
                %v594 = vld [vmem:[%s582 + $0x28] sm:$0xff]
                %595 = vst [vmem:[%s583 + $0x48] sm:$0xff] %v594
                %v596 = vld [vmem:[%s582 + $0x30] sm:$0xff]
                %597 = vst [vmem:[%s583 + $0x60] sm:$0xff] %v596
                %v598 = vld [vmem:[%s582 + $0x38] sm:$0xff]
                %599 = vst [vmem:[%s583 + $0x68] sm:$0xff] %v598
              $region91: #{unet_dsv3_forward.1} parent=85 // loop_footer
                %s581 = sadd.s32 1, %s577
              $region92: #{unet_dsv3_forward.1} parent=85 // loop_footer_branch
                %576 = sbr.rel target = $region88
              $region93: #{unet_dsv3_forward.1} parent=85 // loop_exit
                _
            $region86: #{unet_dsv3_forward.1} parent=81 // pred_fallthru
              _
            // Predicated region
            $region94: #{unet_dsv3_forward.1} parent=81 // pred_check
              _
            $region95: #{unet_dsv3_forward.1} parent=81 // pred_check_branch
              %601 = sbr.rel target = $region97
            $region96: #{unet_dsv3_forward.1} parent=81 // pred_region
              _
            $region97: #{unet_dsv3_forward.1} parent=81 // pred_fallthru
              _
          $region82: #{unet_dsv3_forward.1} parent=77 // pred_fallthru
            _
          %602 = vnop
        $region78: #{unet_dsv3_forward.1} parent=69 // pred_fallthru
          _
      $region70: #{unet_dsv3_forward.1} parent=5 // pred_fallthru
        _
      %p603 = scmp.le.s32.totalorder 2, %s10
      // Predicated region
      $region98: #{unet_dsv3_forward.1} parent=5 // pred_check
        %p604 = pneg %p603
      $region99: #{unet_dsv3_forward.1} parent=5 // pred_check_branch
        %606 = sbr.rel (%p604) target = $region101
      $region100: #{unet_dsv3_forward.1} parent=5 // pred_region
        %s607 = ssub.s32 %s10, 2
        // Predicated region
        $region102: #{unet_dsv3_forward.1} parent=100 // pred_check
          %p608 = pneg %p147
        $region103: #{unet_dsv3_forward.1} parent=100 // pred_check_branch
          %610 = sbr.rel (%p608) target = $region105
        $region104: #{unet_dsv3_forward.1} parent=100 // pred_region
          %s611 = sand.u32 %s132, 1
          %s612 = sand.u32 %s132, 1
          %s613 = smul.addr %s612, 64
          %s614 = scalar_lea.vmem [#allocation3], %s613
        $region105: #{unet_dsv3_forward.1} parent=100 // pred_fallthru
          _
      $region101: #{unet_dsv3_forward.1} parent=5 // pred_fallthru
        _
    $region6: #{unet_dsv3_forward.1} parent=1 // loop_footer
      %s14 = sadd.s32 1, %s10
    $region7: #{unet_dsv3_forward.1} parent=1 // loop_footer_branch
      %9 = sbr.rel target = $region3
    $region8: #{unet_dsv3_forward.1} parent=1 // loop_exit
      _

</llo_original>
